<compile_context>
chip_gen: v7x
topology: tpu7x:2x2x1
jax: 0.10.0
libtpu: 0.0.40
codegen_flags: <defaults>
</compile_context>

<pallas_src>
import jax
import jax.numpy as jnp
import numpy as np
from jax.experimental import pallas as pl
from jax.experimental.pallas import tpu as pltpu

EPS = 1e-5
HEAD_DIM = 4      # real number of outputs (fc_mu)
HEAD_PAD = 128    # lane-dense padded head width


def munet1_kernel(x_ref,
                  w1_ref, g1_ref, be1_ref,
                  w2_ref, g2_ref, be2_ref,
                  w3_ref, g3_ref, be3_ref,
                  wmu_ref, bmu_ref,
                  out_ref):
    """Full forward pass; whole batch + all parameters resident in VMEM."""

    def bn_relu_layer(h_bf16, w_ref, g_ref, be_ref):
        # MXU matmul: bf16 operands, f32 accumulation.  The Linear bias is omitted
        # on purpose: training-mode BatchNorm subtracts the batch mean, which
        # cancels any per-feature bias exactly.
        p = jnp.dot(h_bf16, w_ref[...], preferred_element_type=jnp.float32)
        # Training-mode BatchNorm1d: batch mean + biased variance over axis 0 (f32).
        mean = jnp.mean(p, axis=0, keepdims=True)
        centered = p - mean
        var = jnp.mean(centered * centered, axis=0, keepdims=True)
        # Fold gamma into the rsqrt scale: one full-tile multiply instead of two.
        scale = g_ref[...] * jax.lax.rsqrt(var + EPS)
        h = jnp.maximum(centered * scale + be_ref[...], 0.0)
        return h.astype(jnp.bfloat16)            # next matmul consumes bf16

    h1 = bn_relu_layer(x_ref[...], w1_ref, g1_ref, be1_ref)   # [B, 64]
    h2 = bn_relu_layer(h1, w2_ref, g2_ref, be2_ref)           # [B, 64]
    h3 = bn_relu_layer(h2, w3_ref, g3_ref, be3_ref)           # [B, 32]

    # Head: weight/bias zero-padded to 128 lanes -> full, unmasked lane-dense
    # stores; padded columns are tanh(0) = 0 and get sliced off in the wrapper.
    mu = jnp.tanh(jnp.dot(h3, wmu_ref[...], preferred_element_type=jnp.float32)
                  + bmu_ref[...])                             # [B, 128]
    out_ref[...] = mu.astype(out_ref.dtype)


def pack_params(params):
    """Convert f32 parameters into the kernel operand tuple:
    weights as bf16 [in, out]; head weight/bias zero-padded from 4 to 128 lanes.
    b1/b2/b3 are intentionally dropped (exactly cancelled by train-mode BN)."""
    wmu_pad = jnp.pad(params["wmu"].astype(jnp.bfloat16),
                      ((0, 0), (0, HEAD_PAD - HEAD_DIM)))
    bmu_pad = jnp.pad(params["bmu"], ((0, 0), (0, HEAD_PAD - HEAD_DIM)))
    return (
        params["w1"].astype(jnp.bfloat16), params["g1"], params["be1"],
        params["w2"].astype(jnp.bfloat16), params["g2"], params["be2"],
        params["w3"].astype(jnp.bfloat16), params["g3"], params["be3"],
        wmu_pad, bmu_pad,
    )


@jax.jit
def munet1_forward(x, packed):
    """x: [B, 24] float32.  packed: output of pack_params.  Returns [B, 4] f32."""
    B = x.shape[0]
    vmem = pl.BlockSpec(memory_space=pltpu.MemorySpace.VMEM)
    n_in = 1 + len(packed)
    out_pad = pl.pallas_call(
        munet1_kernel,
        out_shape=jax.ShapeDtypeStruct((B, HEAD_PAD), jnp.float32),
        in_specs=[vmem] * n_in,
        out_specs=vmem,
        compiler_params=pltpu.CompilerParams(vmem_limit_bytes=32 * 1024 * 1024),
    )(x.astype(jnp.bfloat16), *packed)
    return out_pad[:, :HEAD_DIM]


def init_params(key):
    """Init mirroring PyTorch defaults for Linear (U(-1/sqrt(fan_in), 1/sqrt(fan_in))
    for weight and bias); weights stored transposed as [in, out].  BatchNorm affine
    params are randomized around the PyTorch defaults (gamma=1, beta=0) so the test
    actually exercises the gamma/beta path."""
    dims = [(24, 64), (64, 64), (64, 32), (32, 4)]
    names = ["1", "2", "3", "mu"]
    params = {}
    keys = jax.random.split(key, 4 * len(dims))
    for idx, ((fan_in, fan_out), name) in enumerate(zip(dims, names)):
        bound = 1.0 / np.sqrt(fan_in)
        kw, kb = keys[4 * idx], keys[4 * idx + 1]
        params[f"w{name}"] = jax.random.uniform(
            kw, (fan_in, fan_out), jnp.float32, -bound, bound)
        params[f"b{name}"] = jax.random.uniform(
            kb, (1, fan_out), jnp.float32, -bound, bound)
    for idx, (name, f) in enumerate(zip(["1", "2", "3"], [64, 64, 32])):
        kg, kbeta = keys[4 * idx + 2], keys[4 * idx + 3]
        params[f"g{name}"] = jax.random.uniform(kg, (1, f), jnp.float32, 0.8, 1.2)
        params[f"be{name}"] = jax.random.uniform(kbeta, (1, f), jnp.float32, -0.1, 0.1)
    return params


def reference_forward(x, p):
    """Pure-JAX f32 reference matching the PyTorch module (biases included)."""
    def bn_relu(h, g, be):
        mean = jnp.mean(h, axis=0, keepdims=True)
        var = jnp.mean((h - mean) ** 2, axis=0, keepdims=True)
        return jnp.maximum((h - mean) / jnp.sqrt(var + EPS) * g + be, 0.0)

    h = bn_relu(x @ p["w1"] + p["b1"], p["g1"], p["be1"])
    h = bn_relu(h @ p["w2"] + p["b2"], p["g2"], p["be2"])
    h = bn_relu(h @ p["w3"] + p["b3"], p["g3"], p["be3"])
    return jnp.tanh(h @ p["wmu"] + p["bmu"])


if __name__ == "__main__":
    key = jax.random.PRNGKey(0)
    k_param, k_x = jax.random.split(key)

    B = 64                                   # small RL-style batch of state vectors
    x = jax.random.normal(k_x, (B, 24), jnp.float32)
    params = init_params(k_param)
    packed = pack_params(params)

    mu = munet1_forward(x, packed)
    mu = jax.block_until_ready(mu)

    mu_ref = reference_forward(x, params)
    # bf16 matmuls => tolerance loosened to ~bf16 precision vs. the f32 reference.
    np.testing.assert_allclose(np.asarray(mu), np.asarray(mu_ref),
                               rtol=3e-2, atol=3e-2)
    assert mu.shape == (B, HEAD_DIM)

    print("KERNEL_OK")
</pallas_src>

<mosaic_0001>
module attributes {stable_mosaic.version = 11 : i64} {
  func.func @munet1_kernel(%arg0: memref<64x24xbf16, #tpu.memory_space<vmem>>, %arg1: memref<24x64xbf16, #tpu.memory_space<vmem>>, %arg2: memref<1x64xf32, #tpu.memory_space<vmem>>, %arg3: memref<1x64xf32, #tpu.memory_space<vmem>>, %arg4: memref<64x64xbf16, #tpu.memory_space<vmem>>, %arg5: memref<1x64xf32, #tpu.memory_space<vmem>>, %arg6: memref<1x64xf32, #tpu.memory_space<vmem>>, %arg7: memref<64x32xbf16, #tpu.memory_space<vmem>>, %arg8: memref<1x32xf32, #tpu.memory_space<vmem>>, %arg9: memref<1x32xf32, #tpu.memory_space<vmem>>, %arg10: memref<32x128xbf16, #tpu.memory_space<vmem>>, %arg11: memref<1x128xf32, #tpu.memory_space<vmem>>, %arg12: memref<64x128xf32, #tpu.memory_space<vmem>>) attributes {dimension_semantics = [], scalar_prefetch = 0 : i64, scratch_operands = 0 : i64, tpu.core_type = #tpu.core_type<tc>} {
    %c0 = arith.constant 0 : index
    %c0_0 = arith.constant 0 : index
    %0 = vector.load %arg0[%c0, %c0_0] : memref<64x24xbf16, #tpu.memory_space<vmem>>, vector<64x24xbf16>
    %c0_1 = arith.constant 0 : index
    %c0_2 = arith.constant 0 : index
    %1 = vector.load %arg1[%c0_1, %c0_2] : memref<24x64xbf16, #tpu.memory_space<vmem>>, vector<24x64xbf16>
    %cst = arith.constant dense<0.000000e+00> : vector<64x64xf32>
    %2 = tpu.matmul %0, %1, %cst {dimension_numbers = #tpu.dot_dimension_numbers<[1], [0], [0], [1], [0, 0, 1, 1], [], []>} : vector<64x24xbf16>, vector<24x64xbf16>, vector<64x64xf32> -> vector<64x64xf32>
    %cst_3 = arith.constant dense<0.000000e+00> : vector<64xf32>
    %3 = vector.multi_reduction <add>, %2, %cst_3 [0] : vector<64x64xf32> to vector<64xf32>
    %4 = vector.shape_cast %3 : vector<64xf32> to vector<1x64xf32>
    %cst_4 = arith.constant 6.400000e+01 : f32
    %5 = vector.broadcast %cst_4 : f32 to vector<1x64xf32>
    %6 = arith.divf %4, %5 : vector<1x64xf32>
    %7 = vector.broadcast %6 : vector<1x64xf32> to vector<64x64xf32>
    %8 = arith.subf %2, %7 : vector<64x64xf32>
    %9 = arith.mulf %8, %8 : vector<64x64xf32>
    %cst_5 = arith.constant dense<0.000000e+00> : vector<64xf32>
    %10 = vector.multi_reduction <add>, %9, %cst_5 [0] : vector<64x64xf32> to vector<64xf32>
    %11 = vector.shape_cast %10 : vector<64xf32> to vector<1x64xf32>
    %cst_6 = arith.constant 6.400000e+01 : f32
    %12 = vector.broadcast %cst_6 : f32 to vector<1x64xf32>
    %13 = arith.divf %11, %12 : vector<1x64xf32>
    %c0_7 = arith.constant 0 : index
    %c0_8 = arith.constant 0 : index
    %14 = vector.load %arg2[%c0_7, %c0_8] : memref<1x64xf32, #tpu.memory_space<vmem>>, vector<1x64xf32>
    %cst_9 = arith.constant 9.99999974E-6 : f32
    %15 = vector.broadcast %cst_9 : f32 to vector<1x64xf32>
    %16 = arith.addf %13, %15 : vector<1x64xf32>
    %17 = math.rsqrt %16 : vector<1x64xf32>
    %18 = arith.mulf %14, %17 : vector<1x64xf32>
    %19 = vector.broadcast %18 : vector<1x64xf32> to vector<64x64xf32>
    %20 = arith.mulf %8, %19 : vector<64x64xf32>
    %c0_10 = arith.constant 0 : index
    %c0_11 = arith.constant 0 : index
    %21 = vector.load %arg3[%c0_10, %c0_11] : memref<1x64xf32, #tpu.memory_space<vmem>>, vector<1x64xf32>
    %22 = vector.broadcast %21 : vector<1x64xf32> to vector<64x64xf32>
    %23 = arith.addf %20, %22 : vector<64x64xf32>
    %cst_12 = arith.constant 0.000000e+00 : f32
    %24 = vector.broadcast %cst_12 : f32 to vector<64x64xf32>
    %25 = arith.maximumf %23, %24 : vector<64x64xf32>
    %26 = arith.truncf %25 : vector<64x64xf32> to vector<64x64xbf16>
    %c0_13 = arith.constant 0 : index
    %c0_14 = arith.constant 0 : index
    %27 = vector.load %arg4[%c0_13, %c0_14] : memref<64x64xbf16, #tpu.memory_space<vmem>>, vector<64x64xbf16>
    %cst_15 = arith.constant dense<0.000000e+00> : vector<64x64xf32>
    %28 = tpu.matmul %26, %27, %cst_15 {dimension_numbers = #tpu.dot_dimension_numbers<[1], [0], [0], [1], [0, 0, 1, 1], [], []>} : vector<64x64xbf16>, vector<64x64xbf16>, vector<64x64xf32> -> vector<64x64xf32>
    %cst_16 = arith.constant dense<0.000000e+00> : vector<64xf32>
    %29 = vector.multi_reduction <add>, %28, %cst_16 [0] : vector<64x64xf32> to vector<64xf32>
    %30 = vector.shape_cast %29 : vector<64xf32> to vector<1x64xf32>
    %cst_17 = arith.constant 6.400000e+01 : f32
    %31 = vector.broadcast %cst_17 : f32 to vector<1x64xf32>
    %32 = arith.divf %30, %31 : vector<1x64xf32>
    %33 = vector.broadcast %32 : vector<1x64xf32> to vector<64x64xf32>
    %34 = arith.subf %28, %33 : vector<64x64xf32>
    %35 = arith.mulf %34, %34 : vector<64x64xf32>
    %cst_18 = arith.constant dense<0.000000e+00> : vector<64xf32>
    %36 = vector.multi_reduction <add>, %35, %cst_18 [0] : vector<64x64xf32> to vector<64xf32>
    %37 = vector.shape_cast %36 : vector<64xf32> to vector<1x64xf32>
    %cst_19 = arith.constant 6.400000e+01 : f32
    %38 = vector.broadcast %cst_19 : f32 to vector<1x64xf32>
    %39 = arith.divf %37, %38 : vector<1x64xf32>
    %c0_20 = arith.constant 0 : index
    %c0_21 = arith.constant 0 : index
    %40 = vector.load %arg5[%c0_20, %c0_21] : memref<1x64xf32, #tpu.memory_space<vmem>>, vector<1x64xf32>
    %cst_22 = arith.constant 9.99999974E-6 : f32
    %41 = vector.broadcast %cst_22 : f32 to vector<1x64xf32>
    %42 = arith.addf %39, %41 : vector<1x64xf32>
    %43 = math.rsqrt %42 : vector<1x64xf32>
    %44 = arith.mulf %40, %43 : vector<1x64xf32>
    %45 = vector.broadcast %44 : vector<1x64xf32> to vector<64x64xf32>
    %46 = arith.mulf %34, %45 : vector<64x64xf32>
    %c0_23 = arith.constant 0 : index
    %c0_24 = arith.constant 0 : index
    %47 = vector.load %arg6[%c0_23, %c0_24] : memref<1x64xf32, #tpu.memory_space<vmem>>, vector<1x64xf32>
    %48 = vector.broadcast %47 : vector<1x64xf32> to vector<64x64xf32>
    %49 = arith.addf %46, %48 : vector<64x64xf32>
    %cst_25 = arith.constant 0.000000e+00 : f32
    %50 = vector.broadcast %cst_25 : f32 to vector<64x64xf32>
    %51 = arith.maximumf %49, %50 : vector<64x64xf32>
    %52 = arith.truncf %51 : vector<64x64xf32> to vector<64x64xbf16>
    %c0_26 = arith.constant 0 : index
    %c0_27 = arith.constant 0 : index
    %53 = vector.load %arg7[%c0_26, %c0_27] : memref<64x32xbf16, #tpu.memory_space<vmem>>, vector<64x32xbf16>
    %cst_28 = arith.constant dense<0.000000e+00> : vector<64x32xf32>
    %54 = tpu.matmul %52, %53, %cst_28 {dimension_numbers = #tpu.dot_dimension_numbers<[1], [0], [0], [1], [0, 0, 1, 1], [], []>} : vector<64x64xbf16>, vector<64x32xbf16>, vector<64x32xf32> -> vector<64x32xf32>
    %cst_29 = arith.constant dense<0.000000e+00> : vector<32xf32>
    %55 = vector.multi_reduction <add>, %54, %cst_29 [0] : vector<64x32xf32> to vector<32xf32>
    %56 = vector.shape_cast %55 : vector<32xf32> to vector<1x32xf32>
    %cst_30 = arith.constant 6.400000e+01 : f32
    %57 = vector.broadcast %cst_30 : f32 to vector<1x32xf32>
    %58 = arith.divf %56, %57 : vector<1x32xf32>
    %59 = vector.broadcast %58 : vector<1x32xf32> to vector<64x32xf32>
    %60 = arith.subf %54, %59 : vector<64x32xf32>
    %61 = arith.mulf %60, %60 : vector<64x32xf32>
    %cst_31 = arith.constant dense<0.000000e+00> : vector<32xf32>
    %62 = vector.multi_reduction <add>, %61, %cst_31 [0] : vector<64x32xf32> to vector<32xf32>
    %63 = vector.shape_cast %62 : vector<32xf32> to vector<1x32xf32>
    %cst_32 = arith.constant 6.400000e+01 : f32
    %64 = vector.broadcast %cst_32 : f32 to vector<1x32xf32>
    %65 = arith.divf %63, %64 : vector<1x32xf32>
    %c0_33 = arith.constant 0 : index
    %c0_34 = arith.constant 0 : index
    %66 = vector.load %arg8[%c0_33, %c0_34] : memref<1x32xf32, #tpu.memory_space<vmem>>, vector<1x32xf32>
    %cst_35 = arith.constant 9.99999974E-6 : f32
    %67 = vector.broadcast %cst_35 : f32 to vector<1x32xf32>
    %68 = arith.addf %65, %67 : vector<1x32xf32>
    %69 = math.rsqrt %68 : vector<1x32xf32>
    %70 = arith.mulf %66, %69 : vector<1x32xf32>
    %71 = vector.broadcast %70 : vector<1x32xf32> to vector<64x32xf32>
    %72 = arith.mulf %60, %71 : vector<64x32xf32>
    %c0_36 = arith.constant 0 : index
    %c0_37 = arith.constant 0 : index
    %73 = vector.load %arg9[%c0_36, %c0_37] : memref<1x32xf32, #tpu.memory_space<vmem>>, vector<1x32xf32>
    %74 = vector.broadcast %73 : vector<1x32xf32> to vector<64x32xf32>
    %75 = arith.addf %72, %74 : vector<64x32xf32>
    %cst_38 = arith.constant 0.000000e+00 : f32
    %76 = vector.broadcast %cst_38 : f32 to vector<64x32xf32>
    %77 = arith.maximumf %75, %76 : vector<64x32xf32>
    %78 = arith.truncf %77 : vector<64x32xf32> to vector<64x32xbf16>
    %c0_39 = arith.constant 0 : index
    %c0_40 = arith.constant 0 : index
    %79 = vector.load %arg10[%c0_39, %c0_40] : memref<32x128xbf16, #tpu.memory_space<vmem>>, vector<32x128xbf16>
    %cst_41 = arith.constant dense<0.000000e+00> : vector<64x128xf32>
    %80 = tpu.matmul %78, %79, %cst_41 {dimension_numbers = #tpu.dot_dimension_numbers<[1], [0], [0], [1], [0, 0, 1, 1], [], []>} : vector<64x32xbf16>, vector<32x128xbf16>, vector<64x128xf32> -> vector<64x128xf32>
    %c0_42 = arith.constant 0 : index
    %c0_43 = arith.constant 0 : index
    %81 = vector.load %arg11[%c0_42, %c0_43] : memref<1x128xf32, #tpu.memory_space<vmem>>, vector<1x128xf32>
    %82 = vector.broadcast %81 : vector<1x128xf32> to vector<64x128xf32>
    %83 = arith.addf %80, %82 : vector<64x128xf32>
    %84 = math.tanh %83 : vector<64x128xf32>
    %c0_44 = arith.constant 0 : index
    %c0_45 = arith.constant 0 : index
    %85 = vector.load %arg12[%c0_44, %c0_45] : memref<64x128xf32, #tpu.memory_space<vmem>>, vector<64x128xf32>
    tpu.vector_store %arg12[%c0_44, %c0_45], %84 {strides = array<i32>} : memref<64x128xf32, #tpu.memory_space<vmem>>, vector<64x128xf32>,
    return
  }
}

</mosaic_0001>

<llo_original>
// kernel: munet1_forward.1
$region0: #{munet1_forward.1}
  #allocation0 [shape = 'u32[]', space=smem, size = 0x4, offset = 0x4, fixed_abs, tag = 'smem constant byte address 0x4 - core index']
  #allocation1 [shape = 'u32[144,128]{1,0:T(1,128)}', space=vmem, size = 0x12000, scoped, tag = 'internal scratch']
  %s0 = inlined_call_operand.vmem [shape: bf16[64,24], index: 0, kind: input, shape index: {}]
  %s1 = inlined_call_operand.vmem [shape: bf16[24,64], index: 1, kind: input, shape index: {}]
  %s2 = inlined_call_operand.vmem [shape: f32[1,64], index: 2, kind: input, shape index: {}]
  %s3 = inlined_call_operand.vmem [shape: f32[1,64], index: 3, kind: input, shape index: {}]
  %s4 = inlined_call_operand.vmem [shape: bf16[64,64], index: 4, kind: input, shape index: {}]
  %s5 = inlined_call_operand.vmem [shape: f32[1,64], index: 5, kind: input, shape index: {}]
  %s6 = inlined_call_operand.vmem [shape: f32[1,64], index: 6, kind: input, shape index: {}]
  %s7 = inlined_call_operand.vmem [shape: bf16[64,32], index: 7, kind: input, shape index: {}]
  %s8 = inlined_call_operand.vmem [shape: f32[1,32], index: 8, kind: input, shape index: {}]
  %s9 = inlined_call_operand.vmem [shape: f32[1,32], index: 9, kind: input, shape index: {}]
  %s10 = inlined_call_operand.vmem [shape: bf16[32,128], index: 10, kind: input, shape index: {}]
  %s11 = inlined_call_operand.vmem [shape: f32[1,128], index: 11, kind: input, shape index: {}]
  %s12 = inlined_call_operand.vmem [shape: f32[64,128], index: 12, kind: output, shape index: {}]
  %s13 = sld [smem:[#allocation0]]
  $region58: #{munet1_forward.1} parent=0
    _
  %s15 = ssub.s32 1, %s13
  %s16 = scalar_select 0, %s15, %s13
  // Predicated region
  $region2: #{munet1_forward.1} parent=0 // pred_check
    _
  $region3: #{munet1_forward.1} parent=0 // pred_check_branch
    %18 = sbr.rel (0) target = $region5
  $region4: #{munet1_forward.1} parent=0 // pred_region
    _
  $region5: #{munet1_forward.1} parent=0 // pred_fallthru
    _
  // Predicated region
  $region6: #{munet1_forward.1} parent=0 // pred_check
    _
  $region7: #{munet1_forward.1} parent=0 // pred_check_branch
    %20 = sbr.rel (0) target = $region9
  $region8: #{munet1_forward.1} parent=0 // pred_region
    _
  $region9: #{munet1_forward.1} parent=0 // pred_fallthru
    _
  // Predicated region
  $region10: #{munet1_forward.1} parent=0 // pred_check
    _
  $region11: #{munet1_forward.1} parent=0 // pred_check_branch
    %22 = sbr.rel (0) target = $region13
  $region12: #{munet1_forward.1} parent=0 // pred_region
    _
  $region13: #{munet1_forward.1} parent=0 // pred_fallthru
    _
  // Predicated region
  $region14: #{munet1_forward.1} parent=0 // pred_check
    _
  $region15: #{munet1_forward.1} parent=0 // pred_check_branch
    %24 = sbr.rel (0) target = $region17
  $region16: #{munet1_forward.1} parent=0 // pred_region
    _
  $region17: #{munet1_forward.1} parent=0 // pred_fallthru
    _
  // Predicated region
  $region18: #{munet1_forward.1} parent=0 // pred_check
    _
  $region19: #{munet1_forward.1} parent=0 // pred_check_branch
    %26 = sbr.rel (0) target = $region21
  $region20: #{munet1_forward.1} parent=0 // pred_region
    _
  $region21: #{munet1_forward.1} parent=0 // pred_fallthru
    _
  // Predicated region
  $region22: #{munet1_forward.1} parent=0 // pred_check
    _
  $region23: #{munet1_forward.1} parent=0 // pred_check_branch
    %28 = sbr.rel (0) target = $region25
  $region24: #{munet1_forward.1} parent=0 // pred_region
    _
  $region25: #{munet1_forward.1} parent=0 // pred_fallthru
    _
  // Predicated region
  $region26: #{munet1_forward.1} parent=0 // pred_check
    _
  $region27: #{munet1_forward.1} parent=0 // pred_check_branch
    %30 = sbr.rel (0) target = $region29
  $region28: #{munet1_forward.1} parent=0 // pred_region
    _
  $region29: #{munet1_forward.1} parent=0 // pred_fallthru
    _
  // Predicated region
  $region30: #{munet1_forward.1} parent=0 // pred_check
    _
  $region31: #{munet1_forward.1} parent=0 // pred_check_branch
    %32 = sbr.rel (0) target = $region33
  $region32: #{munet1_forward.1} parent=0 // pred_region
    _
  $region33: #{munet1_forward.1} parent=0 // pred_fallthru
    _
  // Predicated region
  $region34: #{munet1_forward.1} parent=0 // pred_check
    _
  $region35: #{munet1_forward.1} parent=0 // pred_check_branch
    %34 = sbr.rel (0) target = $region37
  $region36: #{munet1_forward.1} parent=0 // pred_region
    _
  $region37: #{munet1_forward.1} parent=0 // pred_fallthru
    _
  // Predicated region
  $region38: #{munet1_forward.1} parent=0 // pred_check
    _
  $region39: #{munet1_forward.1} parent=0 // pred_check_branch
    %36 = sbr.rel (0) target = $region41
  $region40: #{munet1_forward.1} parent=0 // pred_region
    _
  $region41: #{munet1_forward.1} parent=0 // pred_fallthru
    _
  // Predicated region
  $region42: #{munet1_forward.1} parent=0 // pred_check
    _
  $region43: #{munet1_forward.1} parent=0 // pred_check_branch
    %38 = sbr.rel (0) target = $region45
  $region44: #{munet1_forward.1} parent=0 // pred_region
    _
  $region45: #{munet1_forward.1} parent=0 // pred_fallthru
    _
  // Predicated region
  $region46: #{munet1_forward.1} parent=0 // pred_check
    _
  $region47: #{munet1_forward.1} parent=0 // pred_check_branch
    %40 = sbr.rel (0) target = $region49
  $region48: #{munet1_forward.1} parent=0 // pred_region
    _
  $region49: #{munet1_forward.1} parent=0 // pred_fallthru
    _
  %v42 = vld [vmem:[%s0] sm:$0xf]
  %v43 = vld [vmem:[%s0 + $0x4] sm:$0xf]
  %v44 = vld [vmem:[%s0 + $0x8] sm:$0xf]
  %v45 = vld [vmem:[%s0 + $0xc] sm:$0xf]
  %v46 = vld [vmem:[%s0 + $0x10] sm:$0xf]
  %v47 = vld [vmem:[%s0 + $0x14] sm:$0xf]
  %v48 = vld [vmem:[%s0 + $0x18] sm:$0xf]
  %v49 = vld [vmem:[%s0 + $0x1c] sm:$0xf]
  %v50 = vld [vmem:[%s1] sm:$0xf]
  %v51 = vld [vmem:[%s1 + $0x4] sm:$0xf]
  %v52 = vld [vmem:[%s1 + $0x8] sm:$0xf]
  %v61 = vunpack.c.l.b16 %v42
  %v62 = vunpack.c.l.b16 %v43
  %v63 = vunpack.c.l.b16 %v44
  %v64 = vunpack.c.l.b16 %v45
  %v65 = vunpack.c.l.b16 %v46
  %v66 = vunpack.c.l.b16 %v47
  %v67 = vunpack.c.l.b16 %v48
  %v68 = vunpack.c.l.b16 %v49
  %v69 = vpack.c.b16 %v62, %v61
  %v70 = vpack.c.b16 %v64, %v63
  %v71 = vpack.c.b16 %v66, %v65
  %v72 = vpack.c.b16 %v68, %v67
  %v76 = vunpack.c.l.b16 %v50
  %v77 = vunpack.c.l.b16 %v51
  %v78 = vunpack.c.l.b16 %v52
  %v79 = vpack.c.b16 %v77, %v76
  %v80 = vpack.c.b16 %v78, %v78
  %vm82 = vcmask 195584
  %v84 = vsel %vm82, %v69, 0
  %v87 = vsel %vm82, %v70, 0
  %v90 = vsel %vm82, %v71, 0
  %v93 = vsel %vm82, %v72, 0
  %vm95 = vcmask 1043456
  %v97 = vsel %vm95, %v80, 0
  %99 = vmatprep.subr.bf16.mxu0 0
  %100 = vmatpush1.bf16.msra.mxu0 %v79
  %101 = vmatprep.subr.bf16.mxu0 0
  %102 = vmatpush1.bf16.msra.mxu0 %v97
  %103 = vmatprep.subr.bf16.mxu0 0
  %104 = vmatpush1.bf16.msra.mxu0 0
  %105 = vmatprep.subr.bf16.mxu0 0
  %106 = vmatpush1.bf16.msra.mxu0 0
  %107 = vmatprep.subr.bf16.mxu0 0
  %108 = vmatpush1.bf16.msra.mxu0 0
  %109 = vmatprep.subr.bf16.mxu0 0
  %110 = vmatpush1.bf16.msra.mxu0 0
  %111 = vmatprep.subr.bf16.mxu0 0
  %112 = vmatpush1.bf16.msra.mxu0 0
  %113 = vmatprep.subr.bf16.mxu0 0
  %114 = vmatpush1.bf16.msra.mxu0 0
  %115 = vmatprep.subr.bf16.mxu0 0
  %116 = vmatpush1.bf16.msra.mxu0 0
  %117 = vmatprep.subr.bf16.mxu0 0
  %118 = vmatpush1.bf16.msra.mxu0 0
  %119 = vmatprep.subr.bf16.mxu0 0
  %120 = vmatpush1.bf16.msra.mxu0 0
  %121 = vmatprep.subr.bf16.mxu0 0
  %122 = vmatpush1.bf16.msra.mxu0 0
  %123 = vmatprep.subr.bf16.mxu0 0
  %124 = vmatpush1.bf16.msra.mxu0 0
  %125 = vmatprep.subr.bf16.mxu0 0
  %126 = vmatpush1.bf16.msra.mxu0 0
  %127 = vmatprep.subr.bf16.mxu0 0
  %128 = vmatpush1.bf16.msra.mxu0 0
  %129 = vmatprep.subr.bf16.mxu0 0
  %130 = vmatpush1.bf16.msra.mxu0 0
  %131 = vmatprep.mubr.bf16.mxu0 0
  %132 = vmatmul.mubr.bf16.gmra.mrb[0].mxu0 %v84
  %v133 = vpop.f32.mrb[0].mxu0
  %v134 = vadd.f32 0.0, %v133
  %v135 = vpop.f32.mrb[0].mxu0
  %v136 = vpop.f32.mrb[0].mxu0
  %v137 = vadd.f32 0.0, %v136
  %v138 = vpop.f32.mrb[0].mxu0
  %139 = vmatprep.mubr.bf16.mxu0 0
  %140 = vmatmul.mubr.bf16.gmra.mrb[0].mxu0 %v87
  %v141 = vpop.f32.mrb[0].mxu0
  %v142 = vadd.f32 0.0, %v141
  %v143 = vpop.f32.mrb[0].mxu0
  %v144 = vpop.f32.mrb[0].mxu0
  %v145 = vadd.f32 0.0, %v144
  %v146 = vpop.f32.mrb[0].mxu0
  %147 = vmatprep.mubr.bf16.mxu0 0
  %148 = vmatmul.mubr.bf16.gmra.mrb[0].mxu0 %v90
  %v149 = vpop.f32.mrb[0].mxu0
  %v150 = vadd.f32 0.0, %v149
  %v151 = vpop.f32.mrb[0].mxu0
  %v152 = vpop.f32.mrb[0].mxu0
  %v153 = vadd.f32 0.0, %v152
  %v154 = vpop.f32.mrb[0].mxu0
  %155 = vmatprep.mubr.bf16.mxu0 0
  %156 = vmatmul.mubr.bf16.gmra.mrb[0].mxu0 %v93
  %v157 = vpop.f32.mrb[0].mxu0
  %v158 = vadd.f32 0.0, %v157
  %v159 = vpop.f32.mrb[0].mxu0
  %v160 = vpop.f32.mrb[0].mxu0
  %v161 = vadd.f32 0.0, %v160
  %v162 = vpop.f32.mrb[0].mxu0
  %163 = vdwg.mxu0
  %vm164 = vcmask 523264
  %v165 = vsel %vm164, %v134, 0.0
  %v166 = vsel %vm164, %v137, 0.0
  %v167 = vadd.f32 %v165, %v166
  %v168 = vsel %vm164, %v142, 0.0
  %v169 = vadd.f32 %v167, %v168
  %v170 = vsel %vm164, %v145, 0.0
  %v171 = vadd.f32 %v169, %v170
  %v172 = vsel %vm164, %v150, 0.0
  %v173 = vadd.f32 %v171, %v172
  %v174 = vsel %vm164, %v153, 0.0
  %v175 = vadd.f32 %v173, %v174
  %v176 = vsel %vm164, %v158, 0.0
  %v177 = vadd.f32 %v175, %v176
  %v178 = vsel %vm164, %v161, 0.0
  %v179 = vadd.f32 %v177, %v178
  %v180 = vrot.slane %v179, 4
  %v181 = vadd.f32 %v179, %v180
  %v182 = vrot.slane %v181, 2
  %v183 = vadd.f32 %v181, %v182
  %v184 = vrot.slane %v183, 1
  %v185 = vadd.f32 %v183, %v184
  %v186 = vrcp.pop 64.0
  %v187 = vmul.f32 %v185, %v186
  %v188 = vsub.f32 %v134, %v187
  %v189 = vsub.f32 %v137, %v187
  %v190 = vsub.f32 %v142, %v187
  %v191 = vsub.f32 %v145, %v187
  %v192 = vsub.f32 %v150, %v187
  %v193 = vsub.f32 %v153, %v187
  %v194 = vsub.f32 %v158, %v187
  %v195 = vsub.f32 %v161, %v187
  %v196 = vmul.f32 %v188, %v188
  %v197 = vmul.f32 %v189, %v189
  %v198 = vmul.f32 %v190, %v190
  %v199 = vmul.f32 %v191, %v191
  %v200 = vmul.f32 %v192, %v192
  %v201 = vmul.f32 %v193, %v193
  %v202 = vmul.f32 %v194, %v194
  %v203 = vmul.f32 %v195, %v195
  %v204 = vsel %vm164, %v196, 0.0
  %v205 = vsel %vm164, %v197, 0.0
  %v206 = vadd.f32 %v204, %v205
  %v207 = vsel %vm164, %v198, 0.0
  %v208 = vadd.f32 %v206, %v207
  %v209 = vsel %vm164, %v199, 0.0
  %v210 = vadd.f32 %v208, %v209
  %v211 = vsel %vm164, %v200, 0.0
  %v212 = vadd.f32 %v210, %v211
  %v213 = vsel %vm164, %v201, 0.0
  %v214 = vadd.f32 %v212, %v213
  %v215 = vsel %vm164, %v202, 0.0
  %v216 = vadd.f32 %v214, %v215
  %v217 = vsel %vm164, %v203, 0.0
  %v218 = vadd.f32 %v216, %v217
  %v219 = vrot.slane %v218, 4
  %v220 = vadd.f32 %v218, %v219
  %v221 = vrot.slane %v220, 2
  %v222 = vadd.f32 %v220, %v221
  %v223 = vrot.slane %v222, 1
  %v224 = vadd.f32 %v222, %v223
  %v225 = vmul.f32 %v224, %v186
  %v226 = vld [vmem:[%s2] sm:$0x1]
  %v227 = vadd.f32 %v225, 1e-05
  %v228 = vrsqrt.pop %v227
  %v229 = vmul.f32 %v226, %v228
  %v231 = vlaneseq
  %v232 = vshrl.u32 %v231, 7
  %v233 = vsub.s32 0, %v232
  %v234 = vrot.slane %v229, %v233
  %v236 = vmul.f32 %v188, %v234
  %v237 = vmul.f32 %v189, %v234
  %v238 = vmul.f32 %v190, %v234
  %v239 = vmul.f32 %v191, %v234
  %v240 = vmul.f32 %v192, %v234
  %v241 = vmul.f32 %v193, %v234
  %v242 = vmul.f32 %v194, %v234
  %v243 = vmul.f32 %v195, %v234
  %v244 = vld [vmem:[%s3] sm:$0x1]
  %v246 = vlaneseq
  %v247 = vshrl.u32 %v246, 7
  %v248 = vsub.s32 0, %v247
  %v249 = vrot.slane %v244, %v248
  %v251 = vadd.f32 %v236, %v249
  %v252 = vadd.f32 %v237, %v249
  %v253 = vadd.f32 %v238, %v249
  %v254 = vadd.f32 %v239, %v249
  %v255 = vadd.f32 %v240, %v249
  %v256 = vadd.f32 %v241, %v249
  %v257 = vadd.f32 %v242, %v249
  %v258 = vadd.f32 %v243, %v249
  %v259 = vmax.f32 %v251, 0.0
  %v260 = vmax.f32 %v252, 0.0
  %v261 = vmax.f32 %v253, 0.0
  %v262 = vmax.f32 %v254, 0.0
  %v263 = vmax.f32 %v255, 0.0
  %v264 = vmax.f32 %v256, 0.0
  %v265 = vmax.f32 %v257, 0.0
  %v266 = vmax.f32 %v258, 0.0
  %v267 = vpack.c.bf16 %v260, %v259
  %v268 = vpack.c.bf16 %v262, %v261
  %v269 = vpack.c.bf16 %v264, %v263
  %v270 = vpack.c.bf16 %v266, %v265
  %v271 = vld [vmem:[%s4] sm:$0xf]
  %v272 = vld [vmem:[%s4 + $0x4] sm:$0xf]
  %v273 = vld [vmem:[%s4 + $0x8] sm:$0xf]
  %v274 = vld [vmem:[%s4 + $0xc] sm:$0xf]
  %v275 = vld [vmem:[%s4 + $0x10] sm:$0xf]
  %v276 = vld [vmem:[%s4 + $0x14] sm:$0xf]
  %v277 = vld [vmem:[%s4 + $0x18] sm:$0xf]
  %v278 = vld [vmem:[%s4 + $0x1c] sm:$0xf]
  %v287 = vunpack.c.l.b16 %v271
  %v288 = vunpack.c.l.b16 %v272
  %v289 = vunpack.c.l.b16 %v273
  %v290 = vunpack.c.l.b16 %v274
  %v291 = vunpack.c.l.b16 %v275
  %v292 = vunpack.c.l.b16 %v276
  %v293 = vunpack.c.l.b16 %v277
  %v294 = vunpack.c.l.b16 %v278
  %v295 = vpack.c.b16 %v288, %v287
  %v296 = vpack.c.b16 %v290, %v289
  %v297 = vpack.c.b16 %v292, %v291
  %v298 = vpack.c.b16 %v294, %v293
  %v304 = vsel %vm164, %v267, 0
  %v307 = vsel %vm164, %v268, 0
  %v310 = vsel %vm164, %v269, 0
  %v313 = vsel %vm164, %v270, 0
  %315 = vmatprep.subr.bf16.mxu0 0
  %316 = vmatpush1.bf16.msra.mxu0 %v295
  %317 = vmatprep.subr.bf16.mxu0 0
  %318 = vmatpush1.bf16.msra.mxu0 %v296
  %319 = vmatprep.subr.bf16.mxu0 0
  %320 = vmatpush1.bf16.msra.mxu0 %v297
  %321 = vmatprep.subr.bf16.mxu0 0
  %322 = vmatpush1.bf16.msra.mxu0 %v298
  %323 = vmatprep.subr.bf16.mxu0 0
  %324 = vmatpush1.bf16.msra.mxu0 0
  %325 = vmatprep.subr.bf16.mxu0 0
  %326 = vmatpush1.bf16.msra.mxu0 0
  %327 = vmatprep.subr.bf16.mxu0 0
  %328 = vmatpush1.bf16.msra.mxu0 0
  %329 = vmatprep.subr.bf16.mxu0 0
  %330 = vmatpush1.bf16.msra.mxu0 0
  %331 = vmatprep.subr.bf16.mxu0 0
  %332 = vmatpush1.bf16.msra.mxu0 0
  %333 = vmatprep.subr.bf16.mxu0 0
  %334 = vmatpush1.bf16.msra.mxu0 0
  %335 = vmatprep.subr.bf16.mxu0 0
  %336 = vmatpush1.bf16.msra.mxu0 0
  %337 = vmatprep.subr.bf16.mxu0 0
  %338 = vmatpush1.bf16.msra.mxu0 0
  %339 = vmatprep.subr.bf16.mxu0 0
  %340 = vmatpush1.bf16.msra.mxu0 0
  %341 = vmatprep.subr.bf16.mxu0 0
  %342 = vmatpush1.bf16.msra.mxu0 0
  %343 = vmatprep.subr.bf16.mxu0 0
  %344 = vmatpush1.bf16.msra.mxu0 0
  %345 = vmatprep.subr.bf16.mxu0 0
  %346 = vmatpush1.bf16.msra.mxu0 0
  %347 = vmatprep.mubr.bf16.mxu0 0
  %348 = vmatmul.mubr.bf16.gmra.mrb[0].mxu0 %v304
  %v349 = vpop.f32.mrb[0].mxu0
  %v350 = vadd.f32 0.0, %v349
  %v351 = vpop.f32.mrb[0].mxu0
  %v352 = vpop.f32.mrb[0].mxu0
  %v353 = vadd.f32 0.0, %v352
  %v354 = vpop.f32.mrb[0].mxu0
  %355 = vmatprep.mubr.bf16.mxu0 0
  %356 = vmatmul.mubr.bf16.gmra.mrb[0].mxu0 %v307
  %v357 = vpop.f32.mrb[0].mxu0
  %v358 = vadd.f32 0.0, %v357
  %v359 = vpop.f32.mrb[0].mxu0
  %v360 = vpop.f32.mrb[0].mxu0
  %v361 = vadd.f32 0.0, %v360
  %v362 = vpop.f32.mrb[0].mxu0
  %363 = vmatprep.mubr.bf16.mxu0 0
  %364 = vmatmul.mubr.bf16.gmra.mrb[0].mxu0 %v310
  %v365 = vpop.f32.mrb[0].mxu0
  %v366 = vadd.f32 0.0, %v365
  %v367 = vpop.f32.mrb[0].mxu0
  %v368 = vpop.f32.mrb[0].mxu0
  %v369 = vadd.f32 0.0, %v368
  %v370 = vpop.f32.mrb[0].mxu0
  %371 = vmatprep.mubr.bf16.mxu0 0
  %372 = vmatmul.mubr.bf16.gmra.mrb[0].mxu0 %v313
  %v373 = vpop.f32.mrb[0].mxu0
  %v374 = vadd.f32 0.0, %v373
  %v375 = vpop.f32.mrb[0].mxu0
  %v376 = vpop.f32.mrb[0].mxu0
  %v377 = vadd.f32 0.0, %v376
  %v378 = vpop.f32.mrb[0].mxu0
  %379 = vdwg.mxu0
  %v380 = vsel %vm164, %v350, 0.0
  %v381 = vsel %vm164, %v353, 0.0
  %v382 = vadd.f32 %v380, %v381
  %v383 = vsel %vm164, %v358, 0.0
  %v384 = vadd.f32 %v382, %v383
  %v385 = vsel %vm164, %v361, 0.0
  %v386 = vadd.f32 %v384, %v385
  %v387 = vsel %vm164, %v366, 0.0
  %v388 = vadd.f32 %v386, %v387
  %v389 = vsel %vm164, %v369, 0.0
  %v390 = vadd.f32 %v388, %v389
  %v391 = vsel %vm164, %v374, 0.0
  %v392 = vadd.f32 %v390, %v391
  %v393 = vsel %vm164, %v377, 0.0
  %v394 = vadd.f32 %v392, %v393
  %v395 = vrot.slane %v394, 4
  %v396 = vadd.f32 %v394, %v395
  %v397 = vrot.slane %v396, 2
  %v398 = vadd.f32 %v396, %v397
  %v399 = vrot.slane %v398, 1
  %v400 = vadd.f32 %v398, %v399
  %v401 = vmul.f32 %v400, %v186
  %v402 = vsub.f32 %v350, %v401
  %v403 = vsub.f32 %v353, %v401
  %v404 = vsub.f32 %v358, %v401
  %v405 = vsub.f32 %v361, %v401
  %v406 = vsub.f32 %v366, %v401
  %v407 = vsub.f32 %v369, %v401
  %v408 = vsub.f32 %v374, %v401
  %v409 = vsub.f32 %v377, %v401
  %v410 = vmul.f32 %v402, %v402
  %v411 = vmul.f32 %v403, %v403
  %v412 = vmul.f32 %v404, %v404
  %v413 = vmul.f32 %v405, %v405
  %v414 = vmul.f32 %v406, %v406
  %v415 = vmul.f32 %v407, %v407
  %v416 = vmul.f32 %v408, %v408
  %v417 = vmul.f32 %v409, %v409
  %v418 = vsel %vm164, %v410, 0.0
  %v419 = vsel %vm164, %v411, 0.0
  %v420 = vadd.f32 %v418, %v419
  %v421 = vsel %vm164, %v412, 0.0
  %v422 = vadd.f32 %v420, %v421
  %v423 = vsel %vm164, %v413, 0.0
  %v424 = vadd.f32 %v422, %v423
  %v425 = vsel %vm164, %v414, 0.0
  %v426 = vadd.f32 %v424, %v425
  %v427 = vsel %vm164, %v415, 0.0
  %v428 = vadd.f32 %v426, %v427
  %v429 = vsel %vm164, %v416, 0.0
  %v430 = vadd.f32 %v428, %v429
  %v431 = vsel %vm164, %v417, 0.0
  %v432 = vadd.f32 %v430, %v431
  %v433 = vrot.slane %v432, 4
  %v434 = vadd.f32 %v432, %v433
  %v435 = vrot.slane %v434, 2
  %v436 = vadd.f32 %v434, %v435
  %v437 = vrot.slane %v436, 1
  %v438 = vadd.f32 %v436, %v437
  %v439 = vmul.f32 %v438, %v186
  %v440 = vld [vmem:[%s5] sm:$0x1]
  %v441 = vadd.f32 %v439, 1e-05
  %v442 = vrsqrt.pop %v441
  %v443 = vmul.f32 %v440, %v442
  %v445 = vlaneseq
  %v446 = vshrl.u32 %v445, 7
  %v447 = vsub.s32 0, %v446
  %v448 = vrot.slane %v443, %v447
  %v450 = vmul.f32 %v402, %v448
  %v451 = vmul.f32 %v403, %v448
  %v452 = vmul.f32 %v404, %v448
  %v453 = vmul.f32 %v405, %v448
  %v454 = vmul.f32 %v406, %v448
  %v455 = vmul.f32 %v407, %v448
  %v456 = vmul.f32 %v408, %v448
  %v457 = vmul.f32 %v409, %v448
  %v458 = vld [vmem:[%s6] sm:$0x1]
  %v460 = vlaneseq
  %v461 = vshrl.u32 %v460, 7
  %v462 = vsub.s32 0, %v461
  %v463 = vrot.slane %v458, %v462
  %v465 = vadd.f32 %v450, %v463
  %v466 = vadd.f32 %v451, %v463
  %v467 = vadd.f32 %v452, %v463
  %v468 = vadd.f32 %v453, %v463
  %v469 = vadd.f32 %v454, %v463
  %v470 = vadd.f32 %v455, %v463
  %v471 = vadd.f32 %v456, %v463
  %v472 = vadd.f32 %v457, %v463
  %v473 = vmax.f32 %v465, 0.0
  %v474 = vmax.f32 %v466, 0.0
  %v475 = vmax.f32 %v467, 0.0
  %v476 = vmax.f32 %v468, 0.0
  %v477 = vmax.f32 %v469, 0.0
  %v478 = vmax.f32 %v470, 0.0
  %v479 = vmax.f32 %v471, 0.0
  %v480 = vmax.f32 %v472, 0.0
  %v481 = vpack.c.bf16 %v474, %v473
  %v482 = vpack.c.bf16 %v476, %v475
  %v483 = vpack.c.bf16 %v478, %v477
  %v484 = vpack.c.bf16 %v480, %v479
  %v485 = vld [vmem:[%s7] sm:$0xf]
  %v486 = vld [vmem:[%s7 + $0x4] sm:$0xf]
  %v487 = vld [vmem:[%s7 + $0x8] sm:$0xf]
  %v488 = vld [vmem:[%s7 + $0xc] sm:$0xf]
  %v489 = vld [vmem:[%s7 + $0x10] sm:$0xf]
  %v490 = vld [vmem:[%s7 + $0x14] sm:$0xf]
  %v491 = vld [vmem:[%s7 + $0x18] sm:$0xf]
  %v492 = vld [vmem:[%s7 + $0x1c] sm:$0xf]
  %v501 = vunpack.c.l.b16 %v485
  %v502 = vunpack.c.l.b16 %v486
  %v503 = vunpack.c.l.b16 %v487
  %v504 = vunpack.c.l.b16 %v488
  %v505 = vunpack.c.l.b16 %v489
  %v506 = vunpack.c.l.b16 %v490
  %v507 = vunpack.c.l.b16 %v491
  %v508 = vunpack.c.l.b16 %v492
  %v509 = vpack.c.b16 %v502, %v501
  %v510 = vpack.c.b16 %v504, %v503
  %v511 = vpack.c.b16 %v506, %v505
  %v512 = vpack.c.b16 %v508, %v507
  %v518 = vsel %vm164, %v481, 0
  %v521 = vsel %vm164, %v482, 0
  %v524 = vsel %vm164, %v483, 0
  %v527 = vsel %vm164, %v484, 0
  %529 = vmatprep.subr.bf16.mxu0 0
  %530 = vmatpush1.bf16.msra.mxu0 %v509
  %531 = vmatprep.subr.bf16.mxu0 0
  %532 = vmatpush1.bf16.msra.mxu0 %v510
  %533 = vmatprep.subr.bf16.mxu0 0
  %534 = vmatpush1.bf16.msra.mxu0 %v511
  %535 = vmatprep.subr.bf16.mxu0 0
  %536 = vmatpush1.bf16.msra.mxu0 %v512
  %537 = vmatprep.subr.bf16.mxu0 0
  %538 = vmatpush1.bf16.msra.mxu0 0
  %539 = vmatprep.subr.bf16.mxu0 0
  %540 = vmatpush1.bf16.msra.mxu0 0
  %541 = vmatprep.subr.bf16.mxu0 0
  %542 = vmatpush1.bf16.msra.mxu0 0
  %543 = vmatprep.subr.bf16.mxu0 0
  %544 = vmatpush1.bf16.msra.mxu0 0
  %545 = vmatprep.subr.bf16.mxu0 0
  %546 = vmatpush1.bf16.msra.mxu0 0
  %547 = vmatprep.subr.bf16.mxu0 0
  %548 = vmatpush1.bf16.msra.mxu0 0
  %549 = vmatprep.subr.bf16.mxu0 0
  %550 = vmatpush1.bf16.msra.mxu0 0
  %551 = vmatprep.subr.bf16.mxu0 0
  %552 = vmatpush1.bf16.msra.mxu0 0
  %553 = vmatprep.subr.bf16.mxu0 0
  %554 = vmatpush1.bf16.msra.mxu0 0
  %555 = vmatprep.subr.bf16.mxu0 0
  %556 = vmatpush1.bf16.msra.mxu0 0
  %557 = vmatprep.subr.bf16.mxu0 0
  %558 = vmatpush1.bf16.msra.mxu0 0
  %559 = vmatprep.subr.bf16.mxu0 0
  %560 = vmatpush1.bf16.msra.mxu0 0
  %561 = vmatprep.mubr.bf16.mxu0 0
  %562 = vmatmul.mubr.bf16.gmra.mrb[0].mxu0 %v518
  %v563 = vpop.f32.mrb[0].mxu0
  %v564 = vadd.f32 0.0, %v563
  %v565 = vpop.f32.mrb[0].mxu0
  %v566 = vpop.f32.mrb[0].mxu0
  %v567 = vadd.f32 0.0, %v566
  %v568 = vpop.f32.mrb[0].mxu0
  %569 = vmatprep.mubr.bf16.mxu0 0
  %570 = vmatmul.mubr.bf16.gmra.mrb[0].mxu0 %v521
  %v571 = vpop.f32.mrb[0].mxu0
  %v572 = vadd.f32 0.0, %v571
  %v573 = vpop.f32.mrb[0].mxu0
  %v574 = vpop.f32.mrb[0].mxu0
  %v575 = vadd.f32 0.0, %v574
  %v576 = vpop.f32.mrb[0].mxu0
  %577 = vmatprep.mubr.bf16.mxu0 0
  %578 = vmatmul.mubr.bf16.gmra.mrb[0].mxu0 %v524
  %v579 = vpop.f32.mrb[0].mxu0
  %v580 = vadd.f32 0.0, %v579
  %v581 = vpop.f32.mrb[0].mxu0
  %v582 = vpop.f32.mrb[0].mxu0
  %v583 = vadd.f32 0.0, %v582
  %v584 = vpop.f32.mrb[0].mxu0
  %585 = vmatprep.mubr.bf16.mxu0 0
  %586 = vmatmul.mubr.bf16.gmra.mrb[0].mxu0 %v527
  %v587 = vpop.f32.mrb[0].mxu0
  %v588 = vadd.f32 0.0, %v587
  %v589 = vpop.f32.mrb[0].mxu0
  %v590 = vpop.f32.mrb[0].mxu0
  %v591 = vadd.f32 0.0, %v590
  %v592 = vpop.f32.mrb[0].mxu0
  %593 = vdwg.mxu0
  %vm594 = vcmask 261120
  %v595 = vsel %vm594, %v564, 0.0
  %v596 = vsel %vm594, %v567, 0.0
  %v597 = vadd.f32 %v595, %v596
  %v598 = vsel %vm594, %v572, 0.0
  %v599 = vadd.f32 %v597, %v598
  %v600 = vsel %vm594, %v575, 0.0
  %v601 = vadd.f32 %v599, %v600
  %v602 = vsel %vm594, %v580, 0.0
  %v603 = vadd.f32 %v601, %v602
  %v604 = vsel %vm594, %v583, 0.0
  %v605 = vadd.f32 %v603, %v604
  %v606 = vsel %vm594, %v588, 0.0
  %v607 = vadd.f32 %v605, %v606
  %v608 = vsel %vm594, %v591, 0.0
  %v609 = vadd.f32 %v607, %v608
  %v610 = vrot.slane %v609, 4
  %v611 = vadd.f32 %v609, %v610
  %v612 = vrot.slane %v611, 2
  %v613 = vadd.f32 %v611, %v612
  %v614 = vrot.slane %v613, 1
  %v615 = vadd.f32 %v613, %v614
  %v616 = vmul.f32 %v615, %v186
  %v617 = vsub.f32 %v564, %v616
  %v618 = vsub.f32 %v567, %v616
  %v619 = vsub.f32 %v572, %v616
  %v620 = vsub.f32 %v575, %v616
  %v621 = vsub.f32 %v580, %v616
  %v622 = vsub.f32 %v583, %v616
  %v623 = vsub.f32 %v588, %v616
  %v624 = vsub.f32 %v591, %v616
  %v625 = vmul.f32 %v617, %v617
  %v626 = vmul.f32 %v618, %v618
  %v627 = vmul.f32 %v619, %v619
  %v628 = vmul.f32 %v620, %v620
  %v629 = vmul.f32 %v621, %v621
  %v630 = vmul.f32 %v622, %v622
  %v631 = vmul.f32 %v623, %v623
  %v632 = vmul.f32 %v624, %v624
  %v633 = vsel %vm594, %v625, 0.0
  %v634 = vsel %vm594, %v626, 0.0
  %v635 = vadd.f32 %v633, %v634
  %v636 = vsel %vm594, %v627, 0.0
  %v637 = vadd.f32 %v635, %v636
  %v638 = vsel %vm594, %v628, 0.0
  %v639 = vadd.f32 %v637, %v638
  %v640 = vsel %vm594, %v629, 0.0
  %v641 = vadd.f32 %v639, %v640
  %v642 = vsel %vm594, %v630, 0.0
  %v643 = vadd.f32 %v641, %v642
  %v644 = vsel %vm594, %v631, 0.0
  %v645 = vadd.f32 %v643, %v644
  %v646 = vsel %vm594, %v632, 0.0
  %v647 = vadd.f32 %v645, %v646
  %v648 = vrot.slane %v647, 4
  %v649 = vadd.f32 %v647, %v648
  %v650 = vrot.slane %v649, 2
  %v651 = vadd.f32 %v649, %v650
  %v652 = vrot.slane %v651, 1
  %v653 = vadd.f32 %v651, %v652
  %v654 = vmul.f32 %v653, %v186
  %v655 = vld [vmem:[%s8] sm:$0x1]
  %v656 = vadd.f32 %v654, 1e-05
  %v657 = vrsqrt.pop %v656
  %v658 = vmul.f32 %v655, %v657
  %v660 = vlaneseq
  %v661 = vshrl.u32 %v660, 7
  %v662 = vsub.s32 0, %v661
  %v663 = vrot.slane %v658, %v662
  %v665 = vmul.f32 %v617, %v663
  %v666 = vmul.f32 %v618, %v663
  %v667 = vmul.f32 %v619, %v663
  %v668 = vmul.f32 %v620, %v663
  %v669 = vmul.f32 %v621, %v663
  %v670 = vmul.f32 %v622, %v663
  %v671 = vmul.f32 %v623, %v663
  %v672 = vmul.f32 %v624, %v663
  %v673 = vld [vmem:[%s9] sm:$0x1]
  %v675 = vlaneseq
  %v676 = vshrl.u32 %v675, 7
  %v677 = vsub.s32 0, %v676
  %v678 = vrot.slane %v673, %v677
  %v680 = vadd.f32 %v665, %v678
  %v681 = vadd.f32 %v666, %v678
  %v682 = vadd.f32 %v667, %v678
  %v683 = vadd.f32 %v668, %v678
  %v684 = vadd.f32 %v669, %v678
  %v685 = vadd.f32 %v670, %v678
  %v686 = vadd.f32 %v671, %v678
  %v687 = vadd.f32 %v672, %v678
  %v688 = vmax.f32 %v680, 0.0
  %v689 = vmax.f32 %v681, 0.0
  %v690 = vmax.f32 %v682, 0.0
  %v691 = vmax.f32 %v683, 0.0
  %v692 = vmax.f32 %v684, 0.0
  %v693 = vmax.f32 %v685, 0.0
  %v694 = vmax.f32 %v686, 0.0
  %v695 = vmax.f32 %v687, 0.0
  %v696 = vpack.c.bf16 %v689, %v688
  %v697 = vpack.c.bf16 %v691, %v690
  %v698 = vpack.c.bf16 %v693, %v692
  %v699 = vpack.c.bf16 %v695, %v694
  %v700 = vld [vmem:[%s10] sm:$0xf]
  %v701 = vld [vmem:[%s10 + $0x4] sm:$0xf]
  %v702 = vld [vmem:[%s10 + $0x8] sm:$0xf]
  %v703 = vld [vmem:[%s10 + $0xc] sm:$0xf]
  %v704 = vld [vmem:[%s11] sm:$0x1]
  %v706 = vlaneseq
  %v707 = vshrl.u32 %v706, 7
  %v708 = vsub.s32 0, %v707
  %v709 = vrot.slane %v704, %v708
  %v715 = vunpack.c.l.b16 %v700
  %v716 = vunpack.c.l.b16 %v701
  %v717 = vunpack.c.l.b16 %v702
  %v718 = vunpack.c.l.b16 %v703
  %v719 = vpack.c.b16 %v716, %v715
  %v720 = vpack.c.b16 %v718, %v717
  %v724 = vsel %vm594, %v696, 0
  %v727 = vsel %vm594, %v697, 0
  %v730 = vsel %vm594, %v698, 0
  %v733 = vsel %vm594, %v699, 0
  %735 = vmatprep.subr.bf16.mxu0 0
  %736 = vmatpush1.bf16.msra.mxu0 %v719
  %737 = vmatprep.subr.bf16.mxu0 0
  %738 = vmatpush1.bf16.msra.mxu0 %v720
  %739 = vmatprep.subr.bf16.mxu0 0
  %740 = vmatpush1.bf16.msra.mxu0 0
  %741 = vmatprep.subr.bf16.mxu0 0
  %742 = vmatpush1.bf16.msra.mxu0 0
  %743 = vmatprep.subr.bf16.mxu0 0
  %744 = vmatpush1.bf16.msra.mxu0 0
  %745 = vmatprep.subr.bf16.mxu0 0
  %746 = vmatpush1.bf16.msra.mxu0 0
  %747 = vmatprep.subr.bf16.mxu0 0
  %748 = vmatpush1.bf16.msra.mxu0 0
  %749 = vmatprep.subr.bf16.mxu0 0
  %750 = vmatpush1.bf16.msra.mxu0 0
  %751 = vmatprep.subr.bf16.mxu0 0
  %752 = vmatpush1.bf16.msra.mxu0 0
  %753 = vmatprep.subr.bf16.mxu0 0
  %754 = vmatpush1.bf16.msra.mxu0 0
  %755 = vmatprep.subr.bf16.mxu0 0
  %756 = vmatpush1.bf16.msra.mxu0 0
  %757 = vmatprep.subr.bf16.mxu0 0
  %758 = vmatpush1.bf16.msra.mxu0 0
  %759 = vmatprep.subr.bf16.mxu0 0
  %760 = vmatpush1.bf16.msra.mxu0 0
  %761 = vmatprep.subr.bf16.mxu0 0
  %762 = vmatpush1.bf16.msra.mxu0 0
  %763 = vmatprep.subr.bf16.mxu0 0
  %764 = vmatpush1.bf16.msra.mxu0 0
  %765 = vmatprep.subr.bf16.mxu0 0
  %766 = vmatpush1.bf16.msra.mxu0 0
  %767 = vmatprep.mubr.bf16.mxu0 0
  %768 = vmatmul.mubr.bf16.gmra.mrb[0].mxu0 %v724
  %v769 = vpop.f32.mrb[0].mxu0
  %v770 = vadd.f32 %v709, %v769
  %v771 = vpop.f32.mrb[0].mxu0
  %v772 = vpop.f32.mrb[0].mxu0
  %v773 = vadd.f32 %v709, %v772
  %v774 = vpop.f32.mrb[0].mxu0
  %775 = vmatprep.mubr.bf16.mxu0 0
  %776 = vmatmul.mubr.bf16.gmra.mrb[0].mxu0 %v727
  %v777 = vpop.f32.mrb[0].mxu0
  %v778 = vadd.f32 %v709, %v777
  %v779 = vpop.f32.mrb[0].mxu0
  %v780 = vpop.f32.mrb[0].mxu0
  %v781 = vadd.f32 %v709, %v780
  %v782 = vpop.f32.mrb[0].mxu0
  %783 = vmatprep.mubr.bf16.mxu0 0
  %784 = vmatmul.mubr.bf16.gmra.mrb[0].mxu0 %v730
  %v785 = vpop.f32.mrb[0].mxu0
  %v786 = vadd.f32 %v709, %v785
  %v787 = vpop.f32.mrb[0].mxu0
  %v788 = vpop.f32.mrb[0].mxu0
  %v789 = vadd.f32 %v709, %v788
  %v790 = vpop.f32.mrb[0].mxu0
  %791 = vmatprep.mubr.bf16.mxu0 0
  %792 = vmatmul.mubr.bf16.gmra.mrb[0].mxu0 %v733
  %v793 = vpop.f32.mrb[0].mxu0
  %v794 = vadd.f32 %v709, %v793
  %v795 = vpop.f32.mrb[0].mxu0
  %v796 = vpop.f32.mrb[0].mxu0
  %v797 = vadd.f32 %v709, %v796
  %v798 = vpop.f32.mrb[0].mxu0
  %799 = vdwg.mxu0
  %v800 = vtanh.pop %v770
  %v801 = vtanh.pop %v773
  %v802 = vtanh.pop %v778
  %v803 = vtanh.pop %v781
  %v804 = vtanh.pop %v786
  %v805 = vtanh.pop %v789
  %v806 = vtanh.pop %v794
  %v807 = vtanh.pop %v797
  %808 = vst [vmem:[%s12] sm:$0xff] %v800
  %809 = vst [vmem:[%s12 + $0x8] sm:$0xff] %v801
  %810 = vst [vmem:[%s12 + $0x10] sm:$0xff] %v802
  %811 = vst [vmem:[%s12 + $0x18] sm:$0xff] %v803
  %812 = vst [vmem:[%s12 + $0x20] sm:$0xff] %v804
  %813 = vst [vmem:[%s12 + $0x28] sm:$0xff] %v805
  %814 = vst [vmem:[%s12 + $0x30] sm:$0xff] %v806
  %815 = vst [vmem:[%s12 + $0x38] sm:$0xff] %v807
  // Predicated region
  $region50: #{munet1_forward.1} parent=0 // pred_check
    _
  $region51: #{munet1_forward.1} parent=0 // pred_check_branch
    %817 = sbr.rel (0) target = $region53
  $region52: #{munet1_forward.1} parent=0 // pred_region
    _
  $region53: #{munet1_forward.1} parent=0 // pred_fallthru
    _
  // Predicated region
  $region54: #{munet1_forward.1} parent=0 // pred_check
    _
  $region55: #{munet1_forward.1} parent=0 // pred_check_branch
    %819 = sbr.rel (0) target = $region57
  $region56: #{munet1_forward.1} parent=0 // pred_region
    _
  $region57: #{munet1_forward.1} parent=0 // pred_fallthru
    _

</llo_original>
